<compile_context>
chip_gen: v5e
topology: v5e:2x2
jax: 0.10.0
libtpu: 0.0.40
codegen_flags: <defaults>
</compile_context>

<pallas_src>
import functools

import jax
import jax.numpy as jnp
from jax.experimental import pallas as pl
from jax.experimental.pallas import tpu as pltpu

D_IN = 28 * 28  # 784
H1 = 128
H2 = 64
Z = 12


def _ae_kernel(x_ref,
               w1_ref, b1_ref, w2_ref, b2_ref, w3_ref, b3_ref,
               w4_ref, b4_ref, w5_ref, b5_ref, w6_ref, b6_ref,
               enc_ref, dec_ref):
    """Full autoencoder forward for one batch tile.

    Matmuls hit the MXU with f32 accumulation; activations/bias adds stay in
    f32 on the VPU/EUP and are cast back to the weight dtype only when fed to
    the next matmul (no-op when everything is f32).
    """
    mm_dtype = w1_ref.dtype
    x = x_ref[...]                                            # (BT, 784)

    # ---- encoder ----
    h = jnp.dot(x, w1_ref[...], preferred_element_type=jnp.float32) + b1_ref[...]
    h = jnp.maximum(h, 0.0)                                   # (BT, 128) f32
    h = jnp.dot(h.astype(mm_dtype), w2_ref[...],
                preferred_element_type=jnp.float32) + b2_ref[...]
    h = jnp.maximum(h, 0.0)                                   # (BT, 64) f32
    enc = jnp.dot(h.astype(mm_dtype), w3_ref[...],
                  preferred_element_type=jnp.float32) + b3_ref[...]
    enc_ref[...] = enc.astype(enc_ref.dtype)                  # (BT, 12)

    # ---- decoder ----
    h = jnp.dot(enc.astype(mm_dtype), w4_ref[...],
                preferred_element_type=jnp.float32) + b4_ref[...]
    h = jnp.maximum(h, 0.0)                                   # (BT, 64) f32
    h = jnp.dot(h.astype(mm_dtype), w5_ref[...],
                preferred_element_type=jnp.float32) + b5_ref[...]
    h = jnp.maximum(h, 0.0)                                   # (BT, 128) f32
    logits = jnp.dot(h.astype(mm_dtype), w6_ref[...],
                     preferred_element_type=jnp.float32) + b6_ref[...]
    dec_ref[...] = jax.nn.sigmoid(logits).astype(dec_ref.dtype)  # (BT, 784)


def _round_up(n, m):
    return ((n + m - 1) // m) * m


@functools.partial(jax.jit, static_argnames=("batch_tile", "compute_dtype"))
def autoencoder_forward(x, params, *, batch_tile=256, compute_dtype=None):
    """x: (B, 784). params: dict of (in,out) weights and (1,out) biases.

    compute_dtype: storage/MXU dtype for x, weights and outputs
    (None -> x.dtype). Accumulation is always f32.
    """
    if compute_dtype is None:
        compute_dtype = x.dtype
    compute_dtype = jnp.dtype(compute_dtype)

    B = x.shape[0]
    # Sublane packing: 8 rows per vreg for f32, 16 for bf16.
    sub = 16 if compute_dtype == jnp.bfloat16 else 8
    bt = min(batch_tile, _round_up(B, sub))
    bt = _round_up(bt, sub)
    b_pad = _round_up(B, bt)

    x_c = x.astype(compute_dtype)
    if b_pad != B:
        x_c = jnp.pad(x_c, ((0, b_pad - B), (0, 0)))

    # Weights streamed/fed to the MXU in compute_dtype; biases kept f32 so the
    # bias add happens on the f32 accumulator (exact, and v5e-safe).
    w = [params[f"w{i}"].astype(compute_dtype) for i in range(1, 7)]
    b = [params[f"b{i}"].astype(jnp.float32) for i in range(1, 7)]

    def full_spec(arr):
        nd = arr.ndim
        return pl.BlockSpec(arr.shape, lambda i, _nd=nd: (0,) * _nd)

    grid = (b_pad // bt,)

    in_specs = [pl.BlockSpec((bt, D_IN), lambda i: (i, 0))]    # x tile
    for wi, bi in zip(w, b):
        in_specs += [full_spec(wi), full_spec(bi)]             # resident params

    out_specs = [
        pl.BlockSpec((bt, Z), lambda i: (i, 0)),               # encoded
        pl.BlockSpec((bt, D_IN), lambda i: (i, 0)),            # decoded
    ]
    out_shape = [
        jax.ShapeDtypeStruct((b_pad, Z), compute_dtype),
        jax.ShapeDtypeStruct((b_pad, D_IN), compute_dtype),
    ]

    # Advisory cost estimate for the XLA scheduler.
    itemsize = compute_dtype.itemsize
    flops = 4 * b_pad * (D_IN * H1 + H1 * H2 + H2 * Z)         # enc + dec matmuls
    bytes_accessed = (
        b_pad * D_IN * itemsize                                # x in
        + b_pad * (Z + D_IN) * itemsize                        # enc + dec out
        + sum(wi.size for wi in w) * itemsize                  # weights
        + sum(bi.size for bi in b) * 4                         # biases (f32)
    )
    cost = pl.CostEstimate(flops=flops,
                           transcendentals=b_pad * D_IN,       # sigmoid exp
                           bytes_accessed=bytes_accessed)

    encoded, decoded = pl.pallas_call(
        _ae_kernel,
        grid_spec=pltpu.PrefetchScalarGridSpec(
            num_scalar_prefetch=0,
            grid=grid,
            in_specs=in_specs,
            out_specs=out_specs,
        ),
        out_shape=out_shape,
        compiler_params=pltpu.CompilerParams(
            dimension_semantics=("parallel",),
            # Raise v5e's 16 MiB scoped default so large batch tiles pipeline;
            # matches the v6e/v7x default and stays within every generation.
            vmem_limit_bytes=32 * 1024 * 1024,
        ),
        cost_estimate=cost,
    )(x_c, w[0], b[0], w[1], b[1], w[2], b[2],
      w[3], b[3], w[4], b[4], w[5], b[5])

    if b_pad != B:
        encoded = encoded[:B]
        decoded = decoded[:B]
    return encoded, decoded


def init_params(key):
    """PyTorch-default-like Linear init (uniform(+-1/sqrt(fan_in))).
    Weights are (in, out); biases are (1, out) so they broadcast cleanly."""
    dims = [(D_IN, H1), (H1, H2), (H2, Z), (Z, H2), (H2, H1), (H1, D_IN)]
    params = {}
    keys = jax.random.split(key, 2 * len(dims))
    for idx, (fan_in, fan_out) in enumerate(dims):
        bound = 1.0 / (fan_in ** 0.5)
        wk, bk = keys[2 * idx], keys[2 * idx + 1]
        params[f"w{idx + 1}"] = jax.random.uniform(
            wk, (fan_in, fan_out), jnp.float32, minval=-bound, maxval=bound)
        params[f"b{idx + 1}"] = jax.random.uniform(
            bk, (1, fan_out), jnp.float32, minval=-bound, maxval=bound)
    return params


def reference_forward(x, params):
    """Pure-JAX reference of the same forward pass (f32)."""
    h = jax.nn.relu(x @ params["w1"] + params["b1"])
    h = jax.nn.relu(h @ params["w2"] + params["b2"])
    enc = h @ params["w3"] + params["b3"]
    h = jax.nn.relu(enc @ params["w4"] + params["b4"])
    h = jax.nn.relu(h @ params["w5"] + params["b5"])
    dec = jax.nn.sigmoid(h @ params["w6"] + params["b6"])
    return enc, dec


if __name__ == "__main__":
    key = jax.random.PRNGKey(0)
    pkey, xkey = jax.random.split(key)
    params = init_params(pkey)

    # --- small f32 run: exact-path correctness check ---
    B_small = 8
    x_small = jax.random.uniform(xkey, (B_small, D_IN), jnp.float32)
    enc, dec = autoencoder_forward(x_small, params, batch_tile=256)
    jax.block_until_ready((enc, dec))

    enc_ref, dec_ref = reference_forward(x_small, params)
    assert enc.shape == (B_small, Z) and dec.shape == (B_small, D_IN)
    assert jnp.allclose(enc, enc_ref, atol=1e-4, rtol=1e-4)
    assert jnp.allclose(dec, dec_ref, atol=1e-4, rtol=1e-4)

    # --- larger bf16 run: exercises the wide-batch-tile / bf16 streaming path
    #     (grid length 2 so the parallel batch axis splits across v7x's 2 TCs) ---
    B_big = 512
    x_big = jax.random.uniform(jax.random.PRNGKey(1), (B_big, D_IN), jnp.float32)
    enc_b, dec_b = autoencoder_forward(
        x_big, params, batch_tile=256, compute_dtype=jnp.bfloat16)
    jax.block_until_ready((enc_b, dec_b))

    enc_rb, dec_rb = reference_forward(x_big, params)
    assert enc_b.shape == (B_big, Z) and dec_b.shape == (B_big, D_IN)
    assert enc_b.dtype == jnp.bfloat16 and dec_b.dtype == jnp.bfloat16
    assert jnp.allclose(enc_b.astype(jnp.float32), enc_rb, atol=5e-2, rtol=5e-2)
    assert jnp.allclose(dec_b.astype(jnp.float32), dec_rb, atol=5e-2, rtol=5e-2)

    print("KERNEL_OK")
</pallas_src>

<mosaic_0001>
module attributes {stable_mosaic.version = 11 : i64} {
  func.func @_ae_kernel(%arg0: i32, %arg1: memref<8x784xf32, #tpu.memory_space<vmem>>, %arg2: memref<784x128xf32, #tpu.memory_space<vmem>>, %arg3: memref<1x128xf32, #tpu.memory_space<vmem>>, %arg4: memref<128x64xf32, #tpu.memory_space<vmem>>, %arg5: memref<1x64xf32, #tpu.memory_space<vmem>>, %arg6: memref<64x12xf32, #tpu.memory_space<vmem>>, %arg7: memref<1x12xf32, #tpu.memory_space<vmem>>, %arg8: memref<12x64xf32, #tpu.memory_space<vmem>>, %arg9: memref<1x64xf32, #tpu.memory_space<vmem>>, %arg10: memref<64x128xf32, #tpu.memory_space<vmem>>, %arg11: memref<1x128xf32, #tpu.memory_space<vmem>>, %arg12: memref<128x784xf32, #tpu.memory_space<vmem>>, %arg13: memref<1x784xf32, #tpu.memory_space<vmem>>, %arg14: memref<8x12xf32, #tpu.memory_space<vmem>>, %arg15: memref<8x784xf32, #tpu.memory_space<vmem>>) attributes {dimension_semantics = [#tpu.dimension_semantics<parallel>], iteration_bounds = array<i64: 1>, scalar_prefetch = 0 : i64, scratch_operands = 0 : i64, tpu.core_type = #tpu.core_type<tc>, window_params = [{transform_indices = @transform_0, window_bounds = array<i64: 8, 784>}, {pipeline_mode = #tpu.pipeline_mode<synchronous>, transform_indices = @transform_1, window_bounds = array<i64: 784, 128>}, {pipeline_mode = #tpu.pipeline_mode<synchronous>, transform_indices = @transform_2, window_bounds = array<i64: 1, 128>}, {pipeline_mode = #tpu.pipeline_mode<synchronous>, transform_indices = @transform_3, window_bounds = array<i64: 128, 64>}, {pipeline_mode = #tpu.pipeline_mode<synchronous>, transform_indices = @transform_4, window_bounds = array<i64: 1, 64>}, {pipeline_mode = #tpu.pipeline_mode<synchronous>, transform_indices = @transform_5, window_bounds = array<i64: 64, 12>}, {pipeline_mode = #tpu.pipeline_mode<synchronous>, transform_indices = @transform_6, window_bounds = array<i64: 1, 12>}, {pipeline_mode = #tpu.pipeline_mode<synchronous>, transform_indices = @transform_7, window_bounds = array<i64: 12, 64>}, {pipeline_mode = #tpu.pipeline_mode<synchronous>, transform_indices = @transform_8, window_bounds = array<i64: 1, 64>}, {pipeline_mode = #tpu.pipeline_mode<synchronous>, transform_indices = @transform_9, window_bounds = array<i64: 64, 128>}, {pipeline_mode = #tpu.pipeline_mode<synchronous>, transform_indices = @transform_10, window_bounds = array<i64: 1, 128>}, {pipeline_mode = #tpu.pipeline_mode<synchronous>, transform_indices = @transform_11, window_bounds = array<i64: 128, 784>}, {pipeline_mode = #tpu.pipeline_mode<synchronous>, transform_indices = @transform_12, window_bounds = array<i64: 1, 784>}, {transform_indices = @transform_13, window_bounds = array<i64: 8, 12>}, {transform_indices = @transform_14, window_bounds = array<i64: 8, 784>}]} {
    %c0 = arith.constant 0 : index
    %c0_0 = arith.constant 0 : index
    %0 = vector.load %arg1[%c0, %c0_0] : memref<8x784xf32, #tpu.memory_space<vmem>>, vector<8x784xf32>
    %c0_1 = arith.constant 0 : index
    %c0_2 = arith.constant 0 : index
    %1 = vector.load %arg2[%c0_1, %c0_2] : memref<784x128xf32, #tpu.memory_space<vmem>>, vector<784x128xf32>
    %cst = arith.constant dense<0.000000e+00> : vector<8x128xf32>
    %2 = tpu.matmul %0, %1, %cst {dimension_numbers = #tpu.dot_dimension_numbers<[1], [0], [0], [1], [0, 0, 1, 1], [], []>} : vector<8x784xf32>, vector<784x128xf32>, vector<8x128xf32> -> vector<8x128xf32>
    %c0_3 = arith.constant 0 : index
    %c0_4 = arith.constant 0 : index
    %3 = vector.load %arg3[%c0_3, %c0_4] : memref<1x128xf32, #tpu.memory_space<vmem>>, vector<1x128xf32>
    %4 = vector.broadcast %3 : vector<1x128xf32> to vector<8x128xf32>
    %5 = arith.addf %2, %4 : vector<8x128xf32>
    %cst_5 = arith.constant 0.000000e+00 : f32
    %6 = vector.broadcast %cst_5 : f32 to vector<8x128xf32>
    %7 = arith.maximumf %5, %6 : vector<8x128xf32>
    %c0_6 = arith.constant 0 : index
    %c0_7 = arith.constant 0 : index
    %8 = vector.load %arg4[%c0_6, %c0_7] : memref<128x64xf32, #tpu.memory_space<vmem>>, vector<128x64xf32>
    %cst_8 = arith.constant dense<0.000000e+00> : vector<8x64xf32>
    %9 = tpu.matmul %7, %8, %cst_8 {dimension_numbers = #tpu.dot_dimension_numbers<[1], [0], [0], [1], [0, 0, 1, 1], [], []>} : vector<8x128xf32>, vector<128x64xf32>, vector<8x64xf32> -> vector<8x64xf32>
    %c0_9 = arith.constant 0 : index
    %c0_10 = arith.constant 0 : index
    %10 = vector.load %arg5[%c0_9, %c0_10] : memref<1x64xf32, #tpu.memory_space<vmem>>, vector<1x64xf32>
    %11 = vector.broadcast %10 : vector<1x64xf32> to vector<8x64xf32>
    %12 = arith.addf %9, %11 : vector<8x64xf32>
    %cst_11 = arith.constant 0.000000e+00 : f32
    %13 = vector.broadcast %cst_11 : f32 to vector<8x64xf32>
    %14 = arith.maximumf %12, %13 : vector<8x64xf32>
    %c0_12 = arith.constant 0 : index
    %c0_13 = arith.constant 0 : index
    %15 = vector.load %arg6[%c0_12, %c0_13] : memref<64x12xf32, #tpu.memory_space<vmem>>, vector<64x12xf32>
    %cst_14 = arith.constant dense<0.000000e+00> : vector<8x12xf32>
    %16 = tpu.matmul %14, %15, %cst_14 {dimension_numbers = #tpu.dot_dimension_numbers<[1], [0], [0], [1], [0, 0, 1, 1], [], []>} : vector<8x64xf32>, vector<64x12xf32>, vector<8x12xf32> -> vector<8x12xf32>
    %c0_15 = arith.constant 0 : index
    %c0_16 = arith.constant 0 : index
    %17 = vector.load %arg7[%c0_15, %c0_16] : memref<1x12xf32, #tpu.memory_space<vmem>>, vector<1x12xf32>
    %18 = vector.broadcast %17 : vector<1x12xf32> to vector<8x12xf32>
    %19 = arith.addf %16, %18 : vector<8x12xf32>
    %c0_17 = arith.constant 0 : index
    %c0_18 = arith.constant 0 : index
    %20 = vector.load %arg14[%c0_17, %c0_18] : memref<8x12xf32, #tpu.memory_space<vmem>>, vector<8x12xf32>
    tpu.vector_store %arg14[%c0_17, %c0_18], %19 {strides = array<i32>} : memref<8x12xf32, #tpu.memory_space<vmem>>, vector<8x12xf32>,
    %c0_19 = arith.constant 0 : index
    %c0_20 = arith.constant 0 : index
    %21 = vector.load %arg8[%c0_19, %c0_20] : memref<12x64xf32, #tpu.memory_space<vmem>>, vector<12x64xf32>
    %cst_21 = arith.constant dense<0.000000e+00> : vector<8x64xf32>
    %22 = tpu.matmul %19, %21, %cst_21 {dimension_numbers = #tpu.dot_dimension_numbers<[1], [0], [0], [1], [0, 0, 1, 1], [], []>} : vector<8x12xf32>, vector<12x64xf32>, vector<8x64xf32> -> vector<8x64xf32>
    %c0_22 = arith.constant 0 : index
    %c0_23 = arith.constant 0 : index
    %23 = vector.load %arg9[%c0_22, %c0_23] : memref<1x64xf32, #tpu.memory_space<vmem>>, vector<1x64xf32>
    %24 = vector.broadcast %23 : vector<1x64xf32> to vector<8x64xf32>
    %25 = arith.addf %22, %24 : vector<8x64xf32>
    %cst_24 = arith.constant 0.000000e+00 : f32
    %26 = vector.broadcast %cst_24 : f32 to vector<8x64xf32>
    %27 = arith.maximumf %25, %26 : vector<8x64xf32>
    %c0_25 = arith.constant 0 : index
    %c0_26 = arith.constant 0 : index
    %28 = vector.load %arg10[%c0_25, %c0_26] : memref<64x128xf32, #tpu.memory_space<vmem>>, vector<64x128xf32>
    %cst_27 = arith.constant dense<0.000000e+00> : vector<8x128xf32>
    %29 = tpu.matmul %27, %28, %cst_27 {dimension_numbers = #tpu.dot_dimension_numbers<[1], [0], [0], [1], [0, 0, 1, 1], [], []>} : vector<8x64xf32>, vector<64x128xf32>, vector<8x128xf32> -> vector<8x128xf32>
    %c0_28 = arith.constant 0 : index
    %c0_29 = arith.constant 0 : index
    %30 = vector.load %arg11[%c0_28, %c0_29] : memref<1x128xf32, #tpu.memory_space<vmem>>, vector<1x128xf32>
    %31 = vector.broadcast %30 : vector<1x128xf32> to vector<8x128xf32>
    %32 = arith.addf %29, %31 : vector<8x128xf32>
    %cst_30 = arith.constant 0.000000e+00 : f32
    %33 = vector.broadcast %cst_30 : f32 to vector<8x128xf32>
    %34 = arith.maximumf %32, %33 : vector<8x128xf32>
    %c0_31 = arith.constant 0 : index
    %c0_32 = arith.constant 0 : index
    %35 = vector.load %arg12[%c0_31, %c0_32] : memref<128x784xf32, #tpu.memory_space<vmem>>, vector<128x784xf32>
    %cst_33 = arith.constant dense<0.000000e+00> : vector<8x784xf32>
    %36 = tpu.matmul %34, %35, %cst_33 {dimension_numbers = #tpu.dot_dimension_numbers<[1], [0], [0], [1], [0, 0, 1, 1], [], []>} : vector<8x128xf32>, vector<128x784xf32>, vector<8x784xf32> -> vector<8x784xf32>
    %c0_34 = arith.constant 0 : index
    %c0_35 = arith.constant 0 : index
    %37 = vector.load %arg13[%c0_34, %c0_35] : memref<1x784xf32, #tpu.memory_space<vmem>>, vector<1x784xf32>
    %38 = vector.broadcast %37 : vector<1x784xf32> to vector<8x784xf32>
    %39 = arith.addf %36, %38 : vector<8x784xf32>
    %40 = arith.negf %39 : vector<8x784xf32>
    %41 = math.exp %40 : vector<8x784xf32>
    %cst_36 = arith.constant 1.000000e+00 : f32
    %42 = vector.broadcast %cst_36 : f32 to vector<8x784xf32>
    %43 = arith.addf %42, %41 : vector<8x784xf32>
    %44 = arith.divf %42, %43 : vector<8x784xf32>
    %c0_37 = arith.constant 0 : index
    %c0_38 = arith.constant 0 : index
    %45 = vector.load %arg15[%c0_37, %c0_38] : memref<8x784xf32, #tpu.memory_space<vmem>>, vector<8x784xf32>
    tpu.vector_store %arg15[%c0_37, %c0_38], %44 {strides = array<i32>} : memref<8x784xf32, #tpu.memory_space<vmem>>, vector<8x784xf32>,
    return
  }
  func.func @transform_0(%arg0: i32) -> (i32, i32) {
    %c0_i32 = arith.constant 0 : i32
    %c0_i32_0 = arith.constant 0 : i32
    return %arg0, %c0_i32 : i32, i32
  }
  func.func @transform_1(%arg0: i32) -> (i32, i32) {
    %c0_i32 = arith.constant 0 : i32
    %c0_i32_0 = arith.constant 0 : i32
    %c0_i32_1 = arith.constant 0 : i32
    return %c0_i32, %c0_i32_0 : i32, i32
  }
  func.func @transform_2(%arg0: i32) -> (i32, i32) {
    %c0_i32 = arith.constant 0 : i32
    %c0_i32_0 = arith.constant 0 : i32
    %c0_i32_1 = arith.constant 0 : i32
    return %c0_i32, %c0_i32_0 : i32, i32
  }
  func.func @transform_3(%arg0: i32) -> (i32, i32) {
    %c0_i32 = arith.constant 0 : i32
    %c0_i32_0 = arith.constant 0 : i32
    %c0_i32_1 = arith.constant 0 : i32
    return %c0_i32, %c0_i32_0 : i32, i32
  }
  func.func @transform_4(%arg0: i32) -> (i32, i32) {
    %c0_i32 = arith.constant 0 : i32
    %c0_i32_0 = arith.constant 0 : i32
    %c0_i32_1 = arith.constant 0 : i32
    return %c0_i32, %c0_i32_0 : i32, i32
  }
  func.func @transform_5(%arg0: i32) -> (i32, i32) {
    %c0_i32 = arith.constant 0 : i32
    %c0_i32_0 = arith.constant 0 : i32
    %c0_i32_1 = arith.constant 0 : i32
    return %c0_i32, %c0_i32_0 : i32, i32
  }
  func.func @transform_6(%arg0: i32) -> (i32, i32) {
    %c0_i32 = arith.constant 0 : i32
    %c0_i32_0 = arith.constant 0 : i32
    %c0_i32_1 = arith.constant 0 : i32
    return %c0_i32, %c0_i32_0 : i32, i32
  }
  func.func @transform_7(%arg0: i32) -> (i32, i32) {
    %c0_i32 = arith.constant 0 : i32
    %c0_i32_0 = arith.constant 0 : i32
    %c0_i32_1 = arith.constant 0 : i32
    return %c0_i32, %c0_i32_0 : i32, i32
  }
  func.func @transform_8(%arg0: i32) -> (i32, i32) {
    %c0_i32 = arith.constant 0 : i32
    %c0_i32_0 = arith.constant 0 : i32
    %c0_i32_1 = arith.constant 0 : i32
    return %c0_i32, %c0_i32_0 : i32, i32
  }
  func.func @transform_9(%arg0: i32) -> (i32, i32) {
    %c0_i32 = arith.constant 0 : i32
    %c0_i32_0 = arith.constant 0 : i32
    %c0_i32_1 = arith.constant 0 : i32
    return %c0_i32, %c0_i32_0 : i32, i32
  }
  func.func @transform_10(%arg0: i32) -> (i32, i32) {
    %c0_i32 = arith.constant 0 : i32
    %c0_i32_0 = arith.constant 0 : i32
    %c0_i32_1 = arith.constant 0 : i32
    return %c0_i32, %c0_i32_0 : i32, i32
  }
  func.func @transform_11(%arg0: i32) -> (i32, i32) {
    %c0_i32 = arith.constant 0 : i32
    %c0_i32_0 = arith.constant 0 : i32
    %c0_i32_1 = arith.constant 0 : i32
    return %c0_i32, %c0_i32_0 : i32, i32
  }
  func.func @transform_12(%arg0: i32) -> (i32, i32) {
    %c0_i32 = arith.constant 0 : i32
    %c0_i32_0 = arith.constant 0 : i32
    %c0_i32_1 = arith.constant 0 : i32
    return %c0_i32, %c0_i32_0 : i32, i32
  }
  func.func @transform_13(%arg0: i32) -> (i32, i32) {
    %c0_i32 = arith.constant 0 : i32
    %c0_i32_0 = arith.constant 0 : i32
    return %arg0, %c0_i32 : i32, i32
  }
  func.func @transform_14(%arg0: i32) -> (i32, i32) {
    %c0_i32 = arith.constant 0 : i32
    %c0_i32_0 = arith.constant 0 : i32
    return %arg0, %c0_i32 : i32, i32
  }
}

</mosaic_0001>

<llo_original>
// kernel: autoencoder_forward.1
$region0: #{autoencoder_forward.1}
  #allocation0 [shape = 'u32[]', space=smem, size = 0x4, offset = 0x4, fixed_abs, tag = 'smem constant byte address 0x4 - core index']
  #allocation1 [shape = 'u32[72,128]{1,0:T(1,128)}', space=vmem, size = 0x9000, scoped, tag = 'internal scratch']
  %s0 = inlined_call_operand.vmem [shape: f32[8,784], index: 0, kind: input, shape index: {}]
  %s1 = inlined_call_operand.vmem [shape: f32[784,128], index: 1, kind: input, shape index: {}]
  %s2 = inlined_call_operand.vmem [shape: f32[1,128], index: 2, kind: input, shape index: {}]
  %s3 = inlined_call_operand.vmem [shape: f32[128,64], index: 3, kind: input, shape index: {}]
  %s4 = inlined_call_operand.vmem [shape: f32[1,64], index: 4, kind: input, shape index: {}]
  %s5 = inlined_call_operand.vmem [shape: f32[64,12], index: 5, kind: input, shape index: {}]
  %s6 = inlined_call_operand.vmem [shape: f32[1,12], index: 6, kind: input, shape index: {}]
  %s7 = inlined_call_operand.vmem [shape: f32[12,64], index: 7, kind: input, shape index: {}]
  %s8 = inlined_call_operand.vmem [shape: f32[1,64], index: 8, kind: input, shape index: {}]
  %s9 = inlined_call_operand.vmem [shape: f32[64,128], index: 9, kind: input, shape index: {}]
  %s10 = inlined_call_operand.vmem [shape: f32[1,128], index: 10, kind: input, shape index: {}]
  %s11 = inlined_call_operand.vmem [shape: f32[128,784], index: 11, kind: input, shape index: {}]
  %s12 = inlined_call_operand.vmem [shape: f32[1,784], index: 12, kind: input, shape index: {}]
  %s13 = inlined_call_operand.hbm [shape: f32[8,12], index: 13, kind: output, shape index: {0}]
  %s14 = inlined_call_operand.hbm [shape: f32[8,784], index: 14, kind: output, shape index: {1}]
  %15 = xla_tuple %s13, %s14
  %s16 = sld [smem:[#allocation0]]
  $region70: #{autoencoder_forward.1} parent=0
    _
  %s18 = ssub.s32 1, %s16
  %s19 = scalar_select 0, %s18, %s16
  $region1: #{autoencoder_forward.1} parent=0
    #allocation2 [shape = 'u8[4096]{0}', space=vmem, size = 0x1000, scoped, tag = 'output window, operand 0, single buffered']
    #allocation3 [shape = 's32[1]{0}', space=sflag, size = 0x4, scoped, tag = 'scoped memory for autoencoder_forward.1']
    #allocation4 [shape = 'u8[28672]{0}', space=vmem, size = 0x7000, scoped, tag = 'output window, operand 1, single buffered']
    #allocation5 [shape = 's32[1]{0}', space=sflag, size = 0x4, scoped, tag = 'scoped memory for autoencoder_forward.1']
    %20 = vsyncpa [#allocation3], 0
    %21 = vsyncpa [#allocation5], 0
    // Predicated region
    $region2: #{autoencoder_forward.1} parent=1 // pred_check
      _
    $region3: #{autoencoder_forward.1} parent=1 // pred_check_branch
      %23 = sbr.rel (0) target = $region5
    $region4: #{autoencoder_forward.1} parent=1 // pred_region
      _
    $region5: #{autoencoder_forward.1} parent=1 // pred_fallthru
      _
    // Predicated region
    $region6: #{autoencoder_forward.1} parent=1 // pred_check
      _
    $region7: #{autoencoder_forward.1} parent=1 // pred_check_branch
      %25 = sbr.rel (0) target = $region9
    $region8: #{autoencoder_forward.1} parent=1 // pred_region
      _
    $region9: #{autoencoder_forward.1} parent=1 // pred_fallthru
      _
    // Predicated region
    $region10: #{autoencoder_forward.1} parent=1 // pred_check
      _
    $region11: #{autoencoder_forward.1} parent=1 // pred_check_branch
      %27 = sbr.rel (0) target = $region13
    $region12: #{autoencoder_forward.1} parent=1 // pred_region
      _
    $region13: #{autoencoder_forward.1} parent=1 // pred_fallthru
      _
    // Predicated region
    $region14: #{autoencoder_forward.1} parent=1 // pred_check
      _
    $region15: #{autoencoder_forward.1} parent=1 // pred_check_branch
      %29 = sbr.rel (0) target = $region17
    $region16: #{autoencoder_forward.1} parent=1 // pred_region
      _
    $region17: #{autoencoder_forward.1} parent=1 // pred_fallthru
      _
    // Predicated region
    $region18: #{autoencoder_forward.1} parent=1 // pred_check
      _
    $region19: #{autoencoder_forward.1} parent=1 // pred_check_branch
      %31 = sbr.rel (0) target = $region21
    $region20: #{autoencoder_forward.1} parent=1 // pred_region
      _
    $region21: #{autoencoder_forward.1} parent=1 // pred_fallthru
      _
    // Predicated region
    $region22: #{autoencoder_forward.1} parent=1 // pred_check
      _
    $region23: #{autoencoder_forward.1} parent=1 // pred_check_branch
      %33 = sbr.rel (0) target = $region25
    $region24: #{autoencoder_forward.1} parent=1 // pred_region
      _
    $region25: #{autoencoder_forward.1} parent=1 // pred_fallthru
      _
    // Predicated region
    $region26: #{autoencoder_forward.1} parent=1 // pred_check
      _
    $region27: #{autoencoder_forward.1} parent=1 // pred_check_branch
      %35 = sbr.rel (0) target = $region29
    $region28: #{autoencoder_forward.1} parent=1 // pred_region
      _
    $region29: #{autoencoder_forward.1} parent=1 // pred_fallthru
      _
    // Predicated region
    $region30: #{autoencoder_forward.1} parent=1 // pred_check
      _
    $region31: #{autoencoder_forward.1} parent=1 // pred_check_branch
      %37 = sbr.rel (0) target = $region33
    $region32: #{autoencoder_forward.1} parent=1 // pred_region
      _
    $region33: #{autoencoder_forward.1} parent=1 // pred_fallthru
      _
    // Predicated region
    $region34: #{autoencoder_forward.1} parent=1 // pred_check
      _
    $region35: #{autoencoder_forward.1} parent=1 // pred_check_branch
      %39 = sbr.rel (0) target = $region37
    $region36: #{autoencoder_forward.1} parent=1 // pred_region
      _
    $region37: #{autoencoder_forward.1} parent=1 // pred_fallthru
      _
    // Predicated region
    $region38: #{autoencoder_forward.1} parent=1 // pred_check
      _
    $region39: #{autoencoder_forward.1} parent=1 // pred_check_branch
      %41 = sbr.rel (0) target = $region41
    $region40: #{autoencoder_forward.1} parent=1 // pred_region
      _
    $region41: #{autoencoder_forward.1} parent=1 // pred_fallthru
      _
    // Predicated region
    $region42: #{autoencoder_forward.1} parent=1 // pred_check
      _
    $region43: #{autoencoder_forward.1} parent=1 // pred_check_branch
      %43 = sbr.rel (0) target = $region45
    $region44: #{autoencoder_forward.1} parent=1 // pred_region
      _
    $region45: #{autoencoder_forward.1} parent=1 // pred_fallthru
      _
    // Predicated region
    $region46: #{autoencoder_forward.1} parent=1 // pred_check
      _
    $region47: #{autoencoder_forward.1} parent=1 // pred_check_branch
      %45 = sbr.rel (0) target = $region49
    $region48: #{autoencoder_forward.1} parent=1 // pred_region
      _
    $region49: #{autoencoder_forward.1} parent=1 // pred_fallthru
      _
    // Predicated region
    $region50: #{autoencoder_forward.1} parent=1 // pred_check
      _
    $region51: #{autoencoder_forward.1} parent=1 // pred_check_branch
      %47 = sbr.rel (0) target = $region53
    $region52: #{autoencoder_forward.1} parent=1 // pred_region
      _
    $region53: #{autoencoder_forward.1} parent=1 // pred_fallthru
      _
    %v48 = vld [vmem:[%s0] sm:$0xff]
    %v49 = vld [vmem:[%s0 + $0x8] sm:$0xff]
    %v50 = vld [vmem:[%s0 + $0x10] sm:$0xff]
    %v51 = vld [vmem:[%s0 + $0x18] sm:$0xff]
    %v52 = vld [vmem:[%s0 + $0x20] sm:$0xff]
    %v53 = vld [vmem:[%s0 + $0x28] sm:$0xff]
    %v54 = vld [vmem:[%s0 + $0x30] sm:$0xff]
    %v55 = vld [vmem:[%s1] sm:$0xff]
    %v56 = vld [vmem:[%s1 + $0x8] sm:$0xff]
    %v57 = vld [vmem:[%s1 + $0x10] sm:$0xff]
    %v58 = vld [vmem:[%s1 + $0x18] sm:$0xff]
    %v59 = vld [vmem:[%s1 + $0x20] sm:$0xff]
    %v60 = vld [vmem:[%s1 + $0x28] sm:$0xff]
    %v61 = vld [vmem:[%s1 + $0x30] sm:$0xff]
    %v62 = vld [vmem:[%s1 + $0x38] sm:$0xff]
    %v63 = vld [vmem:[%s1 + $0x40] sm:$0xff]
    %v64 = vld [vmem:[%s1 + $0x48] sm:$0xff]
    %v65 = vld [vmem:[%s1 + $0x50] sm:$0xff]
    %v66 = vld [vmem:[%s1 + $0x58] sm:$0xff]
    %v67 = vld [vmem:[%s1 + $0x60] sm:$0xff]
    %v68 = vld [vmem:[%s1 + $0x68] sm:$0xff]
    %v69 = vld [vmem:[%s1 + $0x70] sm:$0xff]
    %v70 = vld [vmem:[%s1 + $0x78] sm:$0xff]
    %v71 = vld [vmem:[%s1 + $0x80] sm:$0xff]
    %v72 = vld [vmem:[%s1 + $0x88] sm:$0xff]
    %v73 = vld [vmem:[%s1 + $0x90] sm:$0xff]
    %v74 = vld [vmem:[%s1 + $0x98] sm:$0xff]
    %v75 = vld [vmem:[%s1 + $0xa0] sm:$0xff]
    %v76 = vld [vmem:[%s1 + $0xa8] sm:$0xff]
    %v77 = vld [vmem:[%s1 + $0xb0] sm:$0xff]
    %v78 = vld [vmem:[%s1 + $0xb8] sm:$0xff]
    %v79 = vld [vmem:[%s1 + $0xc0] sm:$0xff]
    %v80 = vld [vmem:[%s1 + $0xc8] sm:$0xff]
    %v81 = vld [vmem:[%s1 + $0xd0] sm:$0xff]
    %v82 = vld [vmem:[%s1 + $0xd8] sm:$0xff]
    %v83 = vld [vmem:[%s1 + $0xe0] sm:$0xff]
    %v84 = vld [vmem:[%s1 + $0xe8] sm:$0xff]
    %v85 = vld [vmem:[%s1 + $0xf0] sm:$0xff]
    %v86 = vld [vmem:[%s1 + $0xf8] sm:$0xff]
    %v87 = vld [vmem:[%s1 + $0x100] sm:$0xff]
    %v88 = vld [vmem:[%s1 + $0x108] sm:$0xff]
    %v89 = vld [vmem:[%s1 + $0x110] sm:$0xff]
    %v90 = vld [vmem:[%s1 + $0x118] sm:$0xff]
    %v91 = vld [vmem:[%s1 + $0x120] sm:$0xff]
    %v92 = vld [vmem:[%s1 + $0x128] sm:$0xff]
    %v93 = vld [vmem:[%s1 + $0x130] sm:$0xff]
    %v94 = vld [vmem:[%s1 + $0x138] sm:$0xff]
    %v95 = vld [vmem:[%s1 + $0x140] sm:$0xff]
    %v96 = vld [vmem:[%s1 + $0x148] sm:$0xff]
    %v97 = vld [vmem:[%s1 + $0x150] sm:$0xff]
    %v98 = vld [vmem:[%s1 + $0x158] sm:$0xff]
    %v99 = vld [vmem:[%s1 + $0x160] sm:$0xff]
    %v100 = vld [vmem:[%s1 + $0x168] sm:$0xff]
    %v101 = vld [vmem:[%s1 + $0x170] sm:$0xff]
    %v102 = vld [vmem:[%s1 + $0x178] sm:$0xff]
    %v103 = vld [vmem:[%s1 + $0x180] sm:$0xff]
    %v104 = vld [vmem:[%s1 + $0x188] sm:$0xff]
    %v105 = vld [vmem:[%s1 + $0x190] sm:$0xff]
    %v106 = vld [vmem:[%s1 + $0x198] sm:$0xff]
    %v107 = vld [vmem:[%s1 + $0x1a0] sm:$0xff]
    %v108 = vld [vmem:[%s1 + $0x1a8] sm:$0xff]
    %v109 = vld [vmem:[%s1 + $0x1b0] sm:$0xff]
    %v110 = vld [vmem:[%s1 + $0x1b8] sm:$0xff]
    %v111 = vld [vmem:[%s1 + $0x1c0] sm:$0xff]
    %v112 = vld [vmem:[%s1 + $0x1c8] sm:$0xff]
    %v113 = vld [vmem:[%s1 + $0x1d0] sm:$0xff]
    %v114 = vld [vmem:[%s1 + $0x1d8] sm:$0xff]
    %v115 = vld [vmem:[%s1 + $0x1e0] sm:$0xff]
    %v116 = vld [vmem:[%s1 + $0x1e8] sm:$0xff]
    %v117 = vld [vmem:[%s1 + $0x1f0] sm:$0xff]
    %v118 = vld [vmem:[%s1 + $0x1f8] sm:$0xff]
    %v119 = vld [vmem:[%s1 + $0x200] sm:$0xff]
    %v120 = vld [vmem:[%s1 + $0x208] sm:$0xff]
    %v121 = vld [vmem:[%s1 + $0x210] sm:$0xff]
    %v122 = vld [vmem:[%s1 + $0x218] sm:$0xff]
    %v123 = vld [vmem:[%s1 + $0x220] sm:$0xff]
    %v124 = vld [vmem:[%s1 + $0x228] sm:$0xff]
    %v125 = vld [vmem:[%s1 + $0x230] sm:$0xff]
    %v126 = vld [vmem:[%s1 + $0x238] sm:$0xff]
    %v127 = vld [vmem:[%s1 + $0x240] sm:$0xff]
    %v128 = vld [vmem:[%s1 + $0x248] sm:$0xff]
    %v129 = vld [vmem:[%s1 + $0x250] sm:$0xff]
    %v130 = vld [vmem:[%s1 + $0x258] sm:$0xff]
    %v131 = vld [vmem:[%s1 + $0x260] sm:$0xff]
    %v132 = vld [vmem:[%s1 + $0x268] sm:$0xff]
    %v133 = vld [vmem:[%s1 + $0x270] sm:$0xff]
    %v134 = vld [vmem:[%s1 + $0x278] sm:$0xff]
    %v135 = vld [vmem:[%s1 + $0x280] sm:$0xff]
    %v136 = vld [vmem:[%s1 + $0x288] sm:$0xff]
    %v137 = vld [vmem:[%s1 + $0x290] sm:$0xff]
    %v138 = vld [vmem:[%s1 + $0x298] sm:$0xff]
    %v139 = vld [vmem:[%s1 + $0x2a0] sm:$0xff]
    %v140 = vld [vmem:[%s1 + $0x2a8] sm:$0xff]
    %v141 = vld [vmem:[%s1 + $0x2b0] sm:$0xff]
    %v142 = vld [vmem:[%s1 + $0x2b8] sm:$0xff]
    %v143 = vld [vmem:[%s1 + $0x2c0] sm:$0xff]
    %v144 = vld [vmem:[%s1 + $0x2c8] sm:$0xff]
    %v145 = vld [vmem:[%s1 + $0x2d0] sm:$0xff]
    %v146 = vld [vmem:[%s1 + $0x2d8] sm:$0xff]
    %v147 = vld [vmem:[%s1 + $0x2e0] sm:$0xff]
    %v148 = vld [vmem:[%s1 + $0x2e8] sm:$0xff]
    %v149 = vld [vmem:[%s1 + $0x2f0] sm:$0xff]
    %v150 = vld [vmem:[%s1 + $0x2f8] sm:$0xff]
    %v151 = vld [vmem:[%s1 + $0x300] sm:$0xff]
    %v152 = vld [vmem:[%s1 + $0x308] sm:$0xff]
    %v153 = vld [vmem:[%s2] sm:$0x1]
    %v155 = vperm.slane %v153, 0
    %vm157 = vcmask 130048
    %v159 = vsel %vm157, %v54, 0
    %161 = vmatpush.msra.mxu0 %v70
    %162 = vmatpush.msra.mxu0 %v69
    %163 = vmatpush.msra.mxu0 %v68
    %164 = vmatpush.msra.mxu0 %v67
    %165 = vmatpush.msra.mxu0 %v66
    %166 = vmatpush.msra.mxu0 %v65
    %167 = vmatpush.msra.mxu0 %v64
    %168 = vmatpush.msra.mxu0 %v63
    %169 = vmatpush.msra.mxu0 %v62
    %170 = vmatpush.msra.mxu0 %v61
    %171 = vmatpush.msra.mxu0 %v60
    %172 = vmatpush.msra.mxu0 %v59
    %173 = vmatpush.msra.mxu0 %v58
    %174 = vmatpush.msra.mxu0 %v57
    %175 = vmatpush.msra.mxu0 %v56
    %176 = vmatpush.msra.mxu0 %v55
    %177 = vmatmul.f32.gmra.mxu0 %v48
    %v178 = vpop.f32.mrf.mxu0
    %v179 = vadd.f32 %v155, %v178
    %180 = vdwg.mxu0
    %181 = vmatpush.msra.mxu0 %v86
    %182 = vmatpush.msra.mxu0 %v85
    %183 = vmatpush.msra.mxu0 %v84
    %184 = vmatpush.msra.mxu0 %v83
    %185 = vmatpush.msra.mxu0 %v82
    %186 = vmatpush.msra.mxu0 %v81
    %187 = vmatpush.msra.mxu0 %v80
    %188 = vmatpush.msra.mxu0 %v79
    %189 = vmatpush.msra.mxu0 %v78
    %190 = vmatpush.msra.mxu0 %v77
    %191 = vmatpush.msra.mxu0 %v76
    %192 = vmatpush.msra.mxu0 %v75
    %193 = vmatpush.msra.mxu0 %v74
    %194 = vmatpush.msra.mxu0 %v73
    %195 = vmatpush.msra.mxu0 %v72
    %196 = vmatpush.msra.mxu0 %v71
    %197 = vmatmul.f32.gmra.mxu0 %v49
    %v198 = vpop.f32.mrf.mxu0
    %v199 = vadd.f32 %v179, %v198
    %200 = vdwg.mxu0
    %201 = vmatpush.msra.mxu0 %v102
    %202 = vmatpush.msra.mxu0 %v101
    %203 = vmatpush.msra.mxu0 %v100
    %204 = vmatpush.msra.mxu0 %v99
    %205 = vmatpush.msra.mxu0 %v98
    %206 = vmatpush.msra.mxu0 %v97
    %207 = vmatpush.msra.mxu0 %v96
    %208 = vmatpush.msra.mxu0 %v95
    %209 = vmatpush.msra.mxu0 %v94
    %210 = vmatpush.msra.mxu0 %v93
    %211 = vmatpush.msra.mxu0 %v92
    %212 = vmatpush.msra.mxu0 %v91
    %213 = vmatpush.msra.mxu0 %v90
    %214 = vmatpush.msra.mxu0 %v89
    %215 = vmatpush.msra.mxu0 %v88
    %216 = vmatpush.msra.mxu0 %v87
    %217 = vmatmul.f32.gmra.mxu0 %v50
    %v218 = vpop.f32.mrf.mxu0
    %v219 = vadd.f32 %v199, %v218
    %220 = vdwg.mxu0
    %221 = vmatpush.msra.mxu0 %v118
    %222 = vmatpush.msra.mxu0 %v117
    %223 = vmatpush.msra.mxu0 %v116
    %224 = vmatpush.msra.mxu0 %v115
    %225 = vmatpush.msra.mxu0 %v114
    %226 = vmatpush.msra.mxu0 %v113
    %227 = vmatpush.msra.mxu0 %v112
    %228 = vmatpush.msra.mxu0 %v111
    %229 = vmatpush.msra.mxu0 %v110
    %230 = vmatpush.msra.mxu0 %v109
    %231 = vmatpush.msra.mxu0 %v108
    %232 = vmatpush.msra.mxu0 %v107
    %233 = vmatpush.msra.mxu0 %v106
    %234 = vmatpush.msra.mxu0 %v105
    %235 = vmatpush.msra.mxu0 %v104
    %236 = vmatpush.msra.mxu0 %v103
    %237 = vmatmul.f32.gmra.mxu0 %v51
    %v238 = vpop.f32.mrf.mxu0
    %v239 = vadd.f32 %v219, %v238
    %240 = vdwg.mxu0
    %241 = vmatpush.msra.mxu0 %v134
    %242 = vmatpush.msra.mxu0 %v133
    %243 = vmatpush.msra.mxu0 %v132
    %244 = vmatpush.msra.mxu0 %v131
    %245 = vmatpush.msra.mxu0 %v130
    %246 = vmatpush.msra.mxu0 %v129
    %247 = vmatpush.msra.mxu0 %v128
    %248 = vmatpush.msra.mxu0 %v127
    %249 = vmatpush.msra.mxu0 %v126
    %250 = vmatpush.msra.mxu0 %v125
    %251 = vmatpush.msra.mxu0 %v124
    %252 = vmatpush.msra.mxu0 %v123
    %253 = vmatpush.msra.mxu0 %v122
    %254 = vmatpush.msra.mxu0 %v121
    %255 = vmatpush.msra.mxu0 %v120
    %256 = vmatpush.msra.mxu0 %v119
    %257 = vmatmul.f32.gmra.mxu0 %v52
    %v258 = vpop.f32.mrf.mxu0
    %v259 = vadd.f32 %v239, %v258
    %260 = vdwg.mxu0
    %261 = vmatpush.msra.mxu0 %v150
    %262 = vmatpush.msra.mxu0 %v149
    %263 = vmatpush.msra.mxu0 %v148
    %264 = vmatpush.msra.mxu0 %v147
    %265 = vmatpush.msra.mxu0 %v146
    %266 = vmatpush.msra.mxu0 %v145
    %267 = vmatpush.msra.mxu0 %v144
    %268 = vmatpush.msra.mxu0 %v143
    %269 = vmatpush.msra.mxu0 %v142
    %270 = vmatpush.msra.mxu0 %v141
    %271 = vmatpush.msra.mxu0 %v140
    %272 = vmatpush.msra.mxu0 %v139
    %273 = vmatpush.msra.mxu0 %v138
    %274 = vmatpush.msra.mxu0 %v137
    %275 = vmatpush.msra.mxu0 %v136
    %276 = vmatpush.msra.mxu0 %v135
    %277 = vmatmul.f32.gmra.mxu0 %v53
    %v278 = vpop.f32.mrf.mxu0
    %v279 = vadd.f32 %v259, %v278
    %280 = vdwg.mxu0
    %281 = vmatpush.msra.mxu0 0.0
    %282 = vmatpush.msra.mxu0 0.0
    %283 = vmatpush.msra.mxu0 0.0
    %284 = vmatpush.msra.mxu0 0.0
    %285 = vmatpush.msra.mxu0 0.0
    %286 = vmatpush.msra.mxu0 0.0
    %287 = vmatpush.msra.mxu0 0.0
    %288 = vmatpush.msra.mxu0 0.0
    %289 = vmatpush.msra.mxu0 0.0
    %290 = vmatpush.msra.mxu0 0.0
    %291 = vmatpush.msra.mxu0 0.0
    %292 = vmatpush.msra.mxu0 0.0
    %293 = vmatpush.msra.mxu0 0.0
    %294 = vmatpush.msra.mxu0 0.0
    %295 = vmatpush.msra.mxu0 %v152
    %296 = vmatpush.msra.mxu0 %v151
    %297 = vmatmul.f32.gmra.mxu0 %v159
    %v298 = vpop.f32.mrf.mxu0
    %v299 = vadd.f32 %v279, %v298
    %300 = vdwg.mxu0
    %v301 = vmax.f32 %v299, 0.0
    %v302 = vld [vmem:[%s3] sm:$0xff]
    %v303 = vld [vmem:[%s3 + $0x8] sm:$0xff]
    %v304 = vld [vmem:[%s3 + $0x10] sm:$0xff]
    %v305 = vld [vmem:[%s3 + $0x18] sm:$0xff]
    %v306 = vld [vmem:[%s3 + $0x20] sm:$0xff]
    %v307 = vld [vmem:[%s3 + $0x28] sm:$0xff]
    %v308 = vld [vmem:[%s3 + $0x30] sm:$0xff]
    %v309 = vld [vmem:[%s3 + $0x38] sm:$0xff]
    %v310 = vld [vmem:[%s3 + $0x40] sm:$0xff]
    %v311 = vld [vmem:[%s3 + $0x48] sm:$0xff]
    %v312 = vld [vmem:[%s3 + $0x50] sm:$0xff]
    %v313 = vld [vmem:[%s3 + $0x58] sm:$0xff]
    %v314 = vld [vmem:[%s3 + $0x60] sm:$0xff]
    %v315 = vld [vmem:[%s3 + $0x68] sm:$0xff]
    %v316 = vld [vmem:[%s3 + $0x70] sm:$0xff]
    %v317 = vld [vmem:[%s3 + $0x78] sm:$0xff]
    %v318 = vld [vmem:[%s4] sm:$0x1]
    %v320 = vperm.slane %v318, 0
    %322 = vmatpush.msra.mxu0 %v317
    %323 = vmatpush.msra.mxu0 %v316
    %324 = vmatpush.msra.mxu0 %v315
    %325 = vmatpush.msra.mxu0 %v314
    %326 = vmatpush.msra.mxu0 %v313
    %327 = vmatpush.msra.mxu0 %v312
    %328 = vmatpush.msra.mxu0 %v311
    %329 = vmatpush.msra.mxu0 %v310
    %330 = vmatpush.msra.mxu0 %v309
    %331 = vmatpush.msra.mxu0 %v308
    %332 = vmatpush.msra.mxu0 %v307
    %333 = vmatpush.msra.mxu0 %v306
    %334 = vmatpush.msra.mxu0 %v305
    %335 = vmatpush.msra.mxu0 %v304
    %336 = vmatpush.msra.mxu0 %v303
    %337 = vmatpush.msra.mxu0 %v302
    %338 = vmatmul.f32.gmra.mxu0 %v301
    %v339 = vpop.f32.mrf.mxu0
    %v340 = vadd.f32 %v320, %v339
    %341 = vdwg.mxu0
    %v342 = vmax.f32 %v340, 0.0
    %v343 = vld [vmem:[%s5] sm:$0xff]
    %v344 = vld [vmem:[%s5 + $0x8] sm:$0xff]
    %v345 = vld [vmem:[%s5 + $0x10] sm:$0xff]
    %v346 = vld [vmem:[%s5 + $0x18] sm:$0xff]
    %v347 = vld [vmem:[%s5 + $0x20] sm:$0xff]
    %v348 = vld [vmem:[%s5 + $0x28] sm:$0xff]
    %v349 = vld [vmem:[%s5 + $0x30] sm:$0xff]
    %v350 = vld [vmem:[%s5 + $0x38] sm:$0xff]
    %v351 = vld [vmem:[%s6] sm:$0x1]
    %v353 = vperm.slane %v351, 0
    %vm355 = vcmask 523264
    %v357 = vsel %vm355, %v342, 0
    %359 = vmatpush.msra.mxu0 0.0
    %360 = vmatpush.msra.mxu0 0.0
    %361 = vmatpush.msra.mxu0 0.0
    %362 = vmatpush.msra.mxu0 0.0
    %363 = vmatpush.msra.mxu0 0.0
    %364 = vmatpush.msra.mxu0 0.0
    %365 = vmatpush.msra.mxu0 0.0
    %366 = vmatpush.msra.mxu0 0.0
    %367 = vmatpush.msra.mxu0 %v350
    %368 = vmatpush.msra.mxu0 %v349
    %369 = vmatpush.msra.mxu0 %v348
    %370 = vmatpush.msra.mxu0 %v347
    %371 = vmatpush.msra.mxu0 %v346
    %372 = vmatpush.msra.mxu0 %v345
    %373 = vmatpush.msra.mxu0 %v344
    %374 = vmatpush.msra.mxu0 %v343
    %375 = vmatmul.f32.gmra.mxu0 %v357
    %v376 = vpop.f32.mrf.mxu0
    %v377 = vadd.f32 %v353, %v376
    %378 = vdwg.mxu0
    %vm379 = vcmask 97280
    %380 = vst.msk [vmem:[#allocation2] sm:$0xff] %vm379, %v377
    %v381 = vld [vmem:[%s7] sm:$0xff]
    %v382 = vld [vmem:[%s7 + $0x8] sm:$0xf]
    %v383 = vld [vmem:[%s8] sm:$0x1]
    %v385 = vperm.slane %v383, 0
    %v388 = vsel %vm379, %v377, 0
    %vm390 = vcmask 1043456
    %v392 = vsel %vm390, %v382, 0
    %394 = vmatpush.msra.mxu0 0.0
    %395 = vmatpush.msra.mxu0 0.0
    %396 = vmatpush.msra.mxu0 0.0
    %397 = vmatpush.msra.mxu0 0.0
    %398 = vmatpush.msra.mxu0 0.0
    %399 = vmatpush.msra.mxu0 0.0
    %400 = vmatpush.msra.mxu0 0.0
    %401 = vmatpush.msra.mxu0 0.0
    %402 = vmatpush.msra.mxu0 0.0
    %403 = vmatpush.msra.mxu0 0.0
    %404 = vmatpush.msra.mxu0 0.0
    %405 = vmatpush.msra.mxu0 0.0
    %406 = vmatpush.msra.mxu0 0.0
    %407 = vmatpush.msra.mxu0 0.0
    %408 = vmatpush.msra.mxu0 %v392
    %409 = vmatpush.msra.mxu0 %v381
    %410 = vmatmul.f32.gmra.mxu0 %v388
    %v411 = vpop.f32.mrf.mxu0
    %v412 = vadd.f32 %v385, %v411
    %413 = vdwg.mxu0
    %v414 = vmax.f32 %v412, 0.0
    %v415 = vld [vmem:[%s9] sm:$0xff]
    %v416 = vld [vmem:[%s9 + $0x8] sm:$0xff]
    %v417 = vld [vmem:[%s9 + $0x10] sm:$0xff]
    %v418 = vld [vmem:[%s9 + $0x18] sm:$0xff]
    %v419 = vld [vmem:[%s9 + $0x20] sm:$0xff]
    %v420 = vld [vmem:[%s9 + $0x28] sm:$0xff]
    %v421 = vld [vmem:[%s9 + $0x30] sm:$0xff]
    %v422 = vld [vmem:[%s9 + $0x38] sm:$0xff]
    %v423 = vld [vmem:[%s10] sm:$0x1]
    %v425 = vperm.slane %v423, 0
    %v428 = vsel %vm355, %v414, 0
    %430 = vmatpush.msra.mxu0 0.0
    %431 = vmatpush.msra.mxu0 0.0
    %432 = vmatpush.msra.mxu0 0.0
    %433 = vmatpush.msra.mxu0 0.0
    %434 = vmatpush.msra.mxu0 0.0
    %435 = vmatpush.msra.mxu0 0.0
    %436 = vmatpush.msra.mxu0 0.0
    %437 = vmatpush.msra.mxu0 0.0
    %438 = vmatpush.msra.mxu0 %v422
    %439 = vmatpush.msra.mxu0 %v421
    %440 = vmatpush.msra.mxu0 %v420
    %441 = vmatpush.msra.mxu0 %v419
    %442 = vmatpush.msra.mxu0 %v418
    %443 = vmatpush.msra.mxu0 %v417
    %444 = vmatpush.msra.mxu0 %v416
    %445 = vmatpush.msra.mxu0 %v415
    %446 = vmatmul.f32.gmra.mxu0 %v428
    %v447 = vpop.f32.mrf.mxu0
    %v448 = vadd.f32 %v425, %v447
    %449 = vdwg.mxu0
    %v450 = vmax.f32 %v448, 0.0
    %v451 = vld [vmem:[%s11] sm:$0xff]
    %v452 = vld [vmem:[%s11 + $0x8] sm:$0xff]
    %v453 = vld [vmem:[%s11 + $0x10] sm:$0xff]
    %v454 = vld [vmem:[%s11 + $0x18] sm:$0xff]
    %v455 = vld [vmem:[%s11 + $0x20] sm:$0xff]
    %v456 = vld [vmem:[%s11 + $0x28] sm:$0xff]
    %v457 = vld [vmem:[%s11 + $0x30] sm:$0xff]
    %v458 = vld [vmem:[%s11 + $0x38] sm:$0xff]
    %v459 = vld [vmem:[%s11 + $0x40] sm:$0xff]
    %v460 = vld [vmem:[%s11 + $0x48] sm:$0xff]
    %v461 = vld [vmem:[%s11 + $0x50] sm:$0xff]
    %v462 = vld [vmem:[%s11 + $0x58] sm:$0xff]
    %v463 = vld [vmem:[%s11 + $0x60] sm:$0xff]
    %v464 = vld [vmem:[%s11 + $0x68] sm:$0xff]
    %v465 = vld [vmem:[%s11 + $0x70] sm:$0xff]
    %v466 = vld [vmem:[%s11 + $0x78] sm:$0xff]
    %v467 = vld [vmem:[%s11 + $0x80] sm:$0xff]
    %v468 = vld [vmem:[%s11 + $0x88] sm:$0xff]
    %v469 = vld [vmem:[%s11 + $0x90] sm:$0xff]
    %v470 = vld [vmem:[%s11 + $0x98] sm:$0xff]
    %v471 = vld [vmem:[%s11 + $0xa0] sm:$0xff]
    %v472 = vld [vmem:[%s11 + $0xa8] sm:$0xff]
    %v473 = vld [vmem:[%s11 + $0xb0] sm:$0xff]
    %v474 = vld [vmem:[%s11 + $0xb8] sm:$0xff]
    %v475 = vld [vmem:[%s11 + $0xc0] sm:$0xff]
    %v476 = vld [vmem:[%s11 + $0xc8] sm:$0xff]
    %v477 = vld [vmem:[%s11 + $0xd0] sm:$0xff]
    %v478 = vld [vmem:[%s11 + $0xd8] sm:$0xff]
    %v479 = vld [vmem:[%s11 + $0xe0] sm:$0xff]
    %v480 = vld [vmem:[%s11 + $0xe8] sm:$0xff]
    %v481 = vld [vmem:[%s11 + $0xf0] sm:$0xff]
    %v482 = vld [vmem:[%s11 + $0xf8] sm:$0xff]
    %v483 = vld [vmem:[%s11 + $0x100] sm:$0xff]
    %v484 = vld [vmem:[%s11 + $0x108] sm:$0xff]
    %v485 = vld [vmem:[%s11 + $0x110] sm:$0xff]
    %v486 = vld [vmem:[%s11 + $0x118] sm:$0xff]
    %v487 = vld [vmem:[%s11 + $0x120] sm:$0xff]
    %v488 = vld [vmem:[%s11 + $0x128] sm:$0xff]
    %v489 = vld [vmem:[%s11 + $0x130] sm:$0xff]
    %v490 = vld [vmem:[%s11 + $0x138] sm:$0xff]
    %v491 = vld [vmem:[%s11 + $0x140] sm:$0xff]
    %v492 = vld [vmem:[%s11 + $0x148] sm:$0xff]
    %v493 = vld [vmem:[%s11 + $0x150] sm:$0xff]
    %v494 = vld [vmem:[%s11 + $0x158] sm:$0xff]
    %v495 = vld [vmem:[%s11 + $0x160] sm:$0xff]
    %v496 = vld [vmem:[%s11 + $0x168] sm:$0xff]
    %v497 = vld [vmem:[%s11 + $0x170] sm:$0xff]
    %v498 = vld [vmem:[%s11 + $0x178] sm:$0xff]
    %v499 = vld [vmem:[%s11 + $0x180] sm:$0xff]
    %v500 = vld [vmem:[%s11 + $0x188] sm:$0xff]
    %v501 = vld [vmem:[%s11 + $0x190] sm:$0xff]
    %v502 = vld [vmem:[%s11 + $0x198] sm:$0xff]
    %v503 = vld [vmem:[%s11 + $0x1a0] sm:$0xff]
    %v504 = vld [vmem:[%s11 + $0x1a8] sm:$0xff]
    %v505 = vld [vmem:[%s11 + $0x1b0] sm:$0xff]
    %v506 = vld [vmem:[%s11 + $0x1b8] sm:$0xff]
    %v507 = vld [vmem:[%s11 + $0x1c0] sm:$0xff]
    %v508 = vld [vmem:[%s11 + $0x1c8] sm:$0xff]
    %v509 = vld [vmem:[%s11 + $0x1d0] sm:$0xff]
    %v510 = vld [vmem:[%s11 + $0x1d8] sm:$0xff]
    %v511 = vld [vmem:[%s11 + $0x1e0] sm:$0xff]
    %v512 = vld [vmem:[%s11 + $0x1e8] sm:$0xff]
    %v513 = vld [vmem:[%s11 + $0x1f0] sm:$0xff]
    %v514 = vld [vmem:[%s11 + $0x1f8] sm:$0xff]
    %v515 = vld [vmem:[%s11 + $0x200] sm:$0xff]
    %v516 = vld [vmem:[%s11 + $0x208] sm:$0xff]
    %v517 = vld [vmem:[%s11 + $0x210] sm:$0xff]
    %v518 = vld [vmem:[%s11 + $0x218] sm:$0xff]
    %v519 = vld [vmem:[%s11 + $0x220] sm:$0xff]
    %v520 = vld [vmem:[%s11 + $0x228] sm:$0xff]
    %v521 = vld [vmem:[%s11 + $0x230] sm:$0xff]
    %v522 = vld [vmem:[%s11 + $0x238] sm:$0xff]
    %v523 = vld [vmem:[%s11 + $0x240] sm:$0xff]
    %v524 = vld [vmem:[%s11 + $0x248] sm:$0xff]
    %v525 = vld [vmem:[%s11 + $0x250] sm:$0xff]
    %v526 = vld [vmem:[%s11 + $0x258] sm:$0xff]
    %v527 = vld [vmem:[%s11 + $0x260] sm:$0xff]
    %v528 = vld [vmem:[%s11 + $0x268] sm:$0xff]
    %v529 = vld [vmem:[%s11 + $0x270] sm:$0xff]
    %v530 = vld [vmem:[%s11 + $0x278] sm:$0xff]
    %v531 = vld [vmem:[%s11 + $0x280] sm:$0xff]
    %v532 = vld [vmem:[%s11 + $0x288] sm:$0xff]
    %v533 = vld [vmem:[%s11 + $0x290] sm:$0xff]
    %v534 = vld [vmem:[%s11 + $0x298] sm:$0xff]
    %v535 = vld [vmem:[%s11 + $0x2a0] sm:$0xff]
    %v536 = vld [vmem:[%s11 + $0x2a8] sm:$0xff]
    %v537 = vld [vmem:[%s11 + $0x2b0] sm:$0xff]
    %v538 = vld [vmem:[%s11 + $0x2b8] sm:$0xff]
    %v539 = vld [vmem:[%s11 + $0x2c0] sm:$0xff]
    %v540 = vld [vmem:[%s11 + $0x2c8] sm:$0xff]
    %v541 = vld [vmem:[%s11 + $0x2d0] sm:$0xff]
    %v542 = vld [vmem:[%s11 + $0x2d8] sm:$0xff]
    %v543 = vld [vmem:[%s11 + $0x2e0] sm:$0xff]
    %v544 = vld [vmem:[%s11 + $0x2e8] sm:$0xff]
    %v545 = vld [vmem:[%s11 + $0x2f0] sm:$0xff]
    %v546 = vld [vmem:[%s11 + $0x2f8] sm:$0xff]
    %v547 = vld [vmem:[%s11 + $0x300] sm:$0xff]
    %v548 = vld [vmem:[%s11 + $0x308] sm:$0xff]
    %v549 = vld [vmem:[%s11 + $0x310] sm:$0xff]
    %v550 = vld [vmem:[%s11 + $0x318] sm:$0xff]
    %v551 = vld [vmem:[%s11 + $0x320] sm:$0xff]
    %v552 = vld [vmem:[%s11 + $0x328] sm:$0xff]
    %v553 = vld [vmem:[%s11 + $0x330] sm:$0xff]
    %v554 = vld [vmem:[%s11 + $0x338] sm:$0xff]
    %v555 = vld [vmem:[%s11 + $0x340] sm:$0xff]
    %v556 = vld [vmem:[%s11 + $0x348] sm:$0xff]
    %v557 = vld [vmem:[%s11 + $0x350] sm:$0xff]
    %v558 = vld [vmem:[%s11 + $0x358] sm:$0xff]
    %v559 = vld [vmem:[%s11 + $0x360] sm:$0xff]
    %v560 = vld [vmem:[%s11 + $0x368] sm:$0xff]
    %v561 = vld [vmem:[%s11 + $0x370] sm:$0xff]
    %v562 = vld [vmem:[%s11 + $0x378] sm:$0xff]
    %v563 = vld [vmem:[%s12] sm:$0x7f]
    %v565 = vperm.slane %v563, 0
    %v566 = vperm.slane %v563, 1
    %v567 = vperm.slane %v563, 2
    %v568 = vperm.slane %v563, 3
    %v569 = vperm.slane %v563, 4
    %v570 = vperm.slane %v563, 5
    %v571 = vperm.slane %v563, 6
    %579 = vmatpush.msra.mxu0 %v556
    %580 = vmatpush.msra.mxu0 %v549
    %581 = vmatpush.msra.mxu0 %v542
    %582 = vmatpush.msra.mxu0 %v535
    %583 = vmatpush.msra.mxu0 %v528
    %584 = vmatpush.msra.mxu0 %v521
    %585 = vmatpush.msra.mxu0 %v514
    %586 = vmatpush.msra.mxu0 %v507
    %587 = vmatpush.msra.mxu0 %v500
    %588 = vmatpush.msra.mxu0 %v493
    %589 = vmatpush.msra.mxu0 %v486
    %590 = vmatpush.msra.mxu0 %v479
    %591 = vmatpush.msra.mxu0 %v472
    %592 = vmatpush.msra.mxu0 %v465
    %593 = vmatpush.msra.mxu0 %v458
    %594 = vmatpush.msra.mxu0 %v451
    %595 = vmatmul.f32.gmra.mxu0 %v450
    %v596 = vpop.f32.mrf.mxu0
    %v597 = vadd.f32 %v565, %v596
    %598 = vdwg.mxu0
    %599 = vmatpush.msra.mxu0 %v557
    %600 = vmatpush.msra.mxu0 %v550
    %601 = vmatpush.msra.mxu0 %v543
    %602 = vmatpush.msra.mxu0 %v536
    %603 = vmatpush.msra.mxu0 %v529
    %604 = vmatpush.msra.mxu0 %v522
    %605 = vmatpush.msra.mxu0 %v515
    %606 = vmatpush.msra.mxu0 %v508
    %607 = vmatpush.msra.mxu0 %v501
    %608 = vmatpush.msra.mxu0 %v494
    %609 = vmatpush.msra.mxu0 %v487
    %610 = vmatpush.msra.mxu0 %v480
    %611 = vmatpush.msra.mxu0 %v473
    %612 = vmatpush.msra.mxu0 %v466
    %613 = vmatpush.msra.mxu0 %v459
    %614 = vmatpush.msra.mxu0 %v452
    %615 = vmatmul.f32.gmra.mxu0 %v450
    %v616 = vpop.f32.mrf.mxu0
    %v617 = vadd.f32 %v566, %v616
    %618 = vdwg.mxu0
    %619 = vmatpush.msra.mxu0 %v558
    %620 = vmatpush.msra.mxu0 %v551
    %621 = vmatpush.msra.mxu0 %v544
    %622 = vmatpush.msra.mxu0 %v537
    %623 = vmatpush.msra.mxu0 %v530
    %624 = vmatpush.msra.mxu0 %v523
    %625 = vmatpush.msra.mxu0 %v516
    %626 = vmatpush.msra.mxu0 %v509
    %627 = vmatpush.msra.mxu0 %v502
    %628 = vmatpush.msra.mxu0 %v495
    %629 = vmatpush.msra.mxu0 %v488
    %630 = vmatpush.msra.mxu0 %v481
    %631 = vmatpush.msra.mxu0 %v474
    %632 = vmatpush.msra.mxu0 %v467
    %633 = vmatpush.msra.mxu0 %v460
    %634 = vmatpush.msra.mxu0 %v453
    %635 = vmatmul.f32.gmra.mxu0 %v450
    %v636 = vpop.f32.mrf.mxu0
    %v637 = vadd.f32 %v567, %v636
    %638 = vdwg.mxu0
    %639 = vmatpush.msra.mxu0 %v559
    %640 = vmatpush.msra.mxu0 %v552
    %641 = vmatpush.msra.mxu0 %v545
    %642 = vmatpush.msra.mxu0 %v538
    %643 = vmatpush.msra.mxu0 %v531
    %644 = vmatpush.msra.mxu0 %v524
    %645 = vmatpush.msra.mxu0 %v517
    %646 = vmatpush.msra.mxu0 %v510
    %647 = vmatpush.msra.mxu0 %v503
    %648 = vmatpush.msra.mxu0 %v496
    %649 = vmatpush.msra.mxu0 %v489
    %650 = vmatpush.msra.mxu0 %v482
    %651 = vmatpush.msra.mxu0 %v475
    %652 = vmatpush.msra.mxu0 %v468
    %653 = vmatpush.msra.mxu0 %v461
    %654 = vmatpush.msra.mxu0 %v454
    %655 = vmatmul.f32.gmra.mxu0 %v450
    %v656 = vpop.f32.mrf.mxu0
    %v657 = vadd.f32 %v568, %v656
    %658 = vdwg.mxu0
    %659 = vmatpush.msra.mxu0 %v560
    %660 = vmatpush.msra.mxu0 %v553
    %661 = vmatpush.msra.mxu0 %v546
    %662 = vmatpush.msra.mxu0 %v539
    %663 = vmatpush.msra.mxu0 %v532
    %664 = vmatpush.msra.mxu0 %v525
    %665 = vmatpush.msra.mxu0 %v518
    %666 = vmatpush.msra.mxu0 %v511
    %667 = vmatpush.msra.mxu0 %v504
    %668 = vmatpush.msra.mxu0 %v497
    %669 = vmatpush.msra.mxu0 %v490
    %670 = vmatpush.msra.mxu0 %v483
    %671 = vmatpush.msra.mxu0 %v476
    %672 = vmatpush.msra.mxu0 %v469
    %673 = vmatpush.msra.mxu0 %v462
    %674 = vmatpush.msra.mxu0 %v455
    %675 = vmatmul.f32.gmra.mxu0 %v450
    %v676 = vpop.f32.mrf.mxu0
    %v677 = vadd.f32 %v569, %v676
    %678 = vdwg.mxu0
    %679 = vmatpush.msra.mxu0 %v561
    %680 = vmatpush.msra.mxu0 %v554
    %681 = vmatpush.msra.mxu0 %v547
    %682 = vmatpush.msra.mxu0 %v540
    %683 = vmatpush.msra.mxu0 %v533
    %684 = vmatpush.msra.mxu0 %v526
    %685 = vmatpush.msra.mxu0 %v519
    %686 = vmatpush.msra.mxu0 %v512
    %687 = vmatpush.msra.mxu0 %v505
    %688 = vmatpush.msra.mxu0 %v498
    %689 = vmatpush.msra.mxu0 %v491
    %690 = vmatpush.msra.mxu0 %v484
    %691 = vmatpush.msra.mxu0 %v477
    %692 = vmatpush.msra.mxu0 %v470
    %693 = vmatpush.msra.mxu0 %v463
    %694 = vmatpush.msra.mxu0 %v456
    %695 = vmatmul.f32.gmra.mxu0 %v450
    %v696 = vpop.f32.mrf.mxu0
    %v697 = vadd.f32 %v570, %v696
    %698 = vdwg.mxu0
    %699 = vmatpush.msra.mxu0 %v562
    %700 = vmatpush.msra.mxu0 %v555
    %701 = vmatpush.msra.mxu0 %v548
    %702 = vmatpush.msra.mxu0 %v541
    %703 = vmatpush.msra.mxu0 %v534
    %704 = vmatpush.msra.mxu0 %v527
    %705 = vmatpush.msra.mxu0 %v520
    %706 = vmatpush.msra.mxu0 %v513
    %707 = vmatpush.msra.mxu0 %v506
    %708 = vmatpush.msra.mxu0 %v499
    %709 = vmatpush.msra.mxu0 %v492
    %710 = vmatpush.msra.mxu0 %v485
    %711 = vmatpush.msra.mxu0 %v478
    %712 = vmatpush.msra.mxu0 %v471
    %713 = vmatpush.msra.mxu0 %v464
    %714 = vmatpush.msra.mxu0 %v457
    %715 = vmatmul.f32.gmra.mxu0 %v450
    %v716 = vpop.f32.mrf.mxu0
    %v717 = vadd.f32 %v571, %v716
    %718 = vdwg.mxu0
    %v719 = vxor.u32 %v597, 2147483648
    %v720 = vxor.u32 %v617, 2147483648
    %v721 = vxor.u32 %v637, 2147483648
    %v722 = vxor.u32 %v657, 2147483648
    %v723 = vxor.u32 %v677, 2147483648
    %v724 = vxor.u32 %v697, 2147483648
    %v725 = vxor.u32 %v717, 2147483648
    %v726 = vmul.f32 %v719, 1.442695
    %v727 = vpow.pop %v726
    %v728 = vmul.f32 %v720, 1.442695
    %v729 = vpow.pop %v728
    %v730 = vmul.f32 %v721, 1.442695
    %v731 = vpow.pop %v730
    %v732 = vmul.f32 %v722, 1.442695
    %v733 = vpow.pop %v732
    %v734 = vmul.f32 %v723, 1.442695
    %v735 = vpow.pop %v734
    %v736 = vmul.f32 %v724, 1.442695
    %v737 = vpow.pop %v736
    %v738 = vmul.f32 %v725, 1.442695
    %v739 = vpow.pop %v738
    %v740 = vadd.f32 %v727, 1.0
    %v741 = vadd.f32 %v729, 1.0
    %v742 = vadd.f32 %v731, 1.0
    %v743 = vadd.f32 %v733, 1.0
    %v744 = vadd.f32 %v735, 1.0
    %v745 = vadd.f32 %v737, 1.0
    %v746 = vadd.f32 %v739, 1.0
    %v747 = vrcp.pop %v740
    %v748 = vmul.f32 %v740, %v747
    %v749 = vsub.f32 1.0, %v748
    %v750 = vmul.f32 %v747, %v749
    %v751 = vadd.f32 %v747, %v750
    %vm752 = vweird.f32 %v740
    %vm753 = vweird.f32 %v747
    %vm754 = vmor %vm752, %vm753
    %v755 = vsel %vm754, %v747, %v751
    %v756 = vand.u32 2147483647, %v740
    %vm757 = vcmp.eq.f32.partialorder %v756, 8.507059e+37
    %v758 = vand.u32 %v740, 2147483648
    %v759 = vor.u32 1.1754944e-38, %v758
    %v760 = vsel %vm757, %v759, %v755
    %v761 = vmul.f32 1.0, %v760
    %v762 = vrcp.pop %v741
    %v763 = vmul.f32 %v741, %v762
    %v764 = vsub.f32 1.0, %v763
    %v765 = vmul.f32 %v762, %v764
    %v766 = vadd.f32 %v762, %v765
    %vm767 = vweird.f32 %v741
    %vm768 = vweird.f32 %v762
    %vm769 = vmor %vm767, %vm768
    %v770 = vsel %vm769, %v762, %v766
    %v771 = vand.u32 2147483647, %v741
    %vm772 = vcmp.eq.f32.partialorder %v771, 8.507059e+37
    %v773 = vand.u32 %v741, 2147483648
    %v774 = vor.u32 1.1754944e-38, %v773
    %v775 = vsel %vm772, %v774, %v770
    %v776 = vmul.f32 1.0, %v775
    %v777 = vrcp.pop %v742
    %v778 = vmul.f32 %v742, %v777
    %v779 = vsub.f32 1.0, %v778
    %v780 = vmul.f32 %v777, %v779
    %v781 = vadd.f32 %v777, %v780
    %vm782 = vweird.f32 %v742
    %vm783 = vweird.f32 %v777
    %vm784 = vmor %vm782, %vm783
    %v785 = vsel %vm784, %v777, %v781
    %v786 = vand.u32 2147483647, %v742
    %vm787 = vcmp.eq.f32.partialorder %v786, 8.507059e+37
    %v788 = vand.u32 %v742, 2147483648
    %v789 = vor.u32 1.1754944e-38, %v788
    %v790 = vsel %vm787, %v789, %v785
    %v791 = vmul.f32 1.0, %v790
    %v792 = vrcp.pop %v743
    %v793 = vmul.f32 %v743, %v792
    %v794 = vsub.f32 1.0, %v793
    %v795 = vmul.f32 %v792, %v794
    %v796 = vadd.f32 %v792, %v795
    %vm797 = vweird.f32 %v743
    %vm798 = vweird.f32 %v792
    %vm799 = vmor %vm797, %vm798
    %v800 = vsel %vm799, %v792, %v796
    %v801 = vand.u32 2147483647, %v743
    %vm802 = vcmp.eq.f32.partialorder %v801, 8.507059e+37
    %v803 = vand.u32 %v743, 2147483648
    %v804 = vor.u32 1.1754944e-38, %v803
    %v805 = vsel %vm802, %v804, %v800
    %v806 = vmul.f32 1.0, %v805
    %v807 = vrcp.pop %v744
    %v808 = vmul.f32 %v744, %v807
    %v809 = vsub.f32 1.0, %v808
    %v810 = vmul.f32 %v807, %v809
    %v811 = vadd.f32 %v807, %v810
    %vm812 = vweird.f32 %v744
    %vm813 = vweird.f32 %v807
    %vm814 = vmor %vm812, %vm813
    %v815 = vsel %vm814, %v807, %v811
    %v816 = vand.u32 2147483647, %v744
    %vm817 = vcmp.eq.f32.partialorder %v816, 8.507059e+37
    %v818 = vand.u32 %v744, 2147483648
    %v819 = vor.u32 1.1754944e-38, %v818
    %v820 = vsel %vm817, %v819, %v815
    %v821 = vmul.f32 1.0, %v820
    %v822 = vrcp.pop %v745
    %v823 = vmul.f32 %v745, %v822
    %v824 = vsub.f32 1.0, %v823
    %v825 = vmul.f32 %v822, %v824
    %v826 = vadd.f32 %v822, %v825
    %vm827 = vweird.f32 %v745
    %vm828 = vweird.f32 %v822
    %vm829 = vmor %vm827, %vm828
    %v830 = vsel %vm829, %v822, %v826
    %v831 = vand.u32 2147483647, %v745
    %vm832 = vcmp.eq.f32.partialorder %v831, 8.507059e+37
    %v833 = vand.u32 %v745, 2147483648
    %v834 = vor.u32 1.1754944e-38, %v833
    %v835 = vsel %vm832, %v834, %v830
    %v836 = vmul.f32 1.0, %v835
    %v837 = vrcp.pop %v746
    %v838 = vmul.f32 %v746, %v837
    %v839 = vsub.f32 1.0, %v838
    %v840 = vmul.f32 %v837, %v839
    %v841 = vadd.f32 %v837, %v840
    %vm842 = vweird.f32 %v746
    %vm843 = vweird.f32 %v837
    %vm844 = vmor %vm842, %vm843
    %v845 = vsel %vm844, %v837, %v841
    %v846 = vand.u32 2147483647, %v746
    %vm847 = vcmp.eq.f32.partialorder %v846, 8.507059e+37
    %v848 = vand.u32 %v746, 2147483648
    %v849 = vor.u32 1.1754944e-38, %v848
    %v850 = vsel %vm847, %v849, %v845
    %v851 = vmul.f32 1.0, %v850
    %852 = vst [vmem:[#allocation4] sm:$0xff] %v761
    %853 = vst [vmem:[#allocation4 + $0x8] sm:$0xff] %v776
    %854 = vst [vmem:[#allocation4 + $0x10] sm:$0xff] %v791
    %855 = vst [vmem:[#allocation4 + $0x18] sm:$0xff] %v806
    %856 = vst [vmem:[#allocation4 + $0x20] sm:$0xff] %v821
    %857 = vst [vmem:[#allocation4 + $0x28] sm:$0xff] %v836
    %858 = vst.msk [vmem:[#allocation4 + $0x30] sm:$0xff] %vm157, %v851
    // Predicated region
    $region54: #{autoencoder_forward.1} parent=1 // pred_check
      _
    $region55: #{autoencoder_forward.1} parent=1 // pred_check_branch
      %860 = sbr.rel (0) target = $region57
    $region56: #{autoencoder_forward.1} parent=1 // pred_region
      %862 = vsyncadd [#allocation3], 0
      %s864 = sshll.u32 [#allocation2], 4
      %s865 = int_to_ptr.vmem [resolvable:$true] %s864
      %s866 = sshll.u32 %s13, 4
      %s867 = int_to_ptr.hbm [resolvable:$true] %s866
      %869 = dma.vmem_to_hbm [thread:$0]  %s865, 128, %s867, [#allocation3]
    $region57: #{autoencoder_forward.1} parent=1 // pred_fallthru
      _
    // Predicated region
    $region58: #{autoencoder_forward.1} parent=1 // pred_check
      _
    $region59: #{autoencoder_forward.1} parent=1 // pred_check_branch
      %871 = sbr.rel (0) target = $region61
    $region60: #{autoencoder_forward.1} parent=1 // pred_region
      %873 = vsyncadd [#allocation5], 0
      %s875 = sshll.u32 [#allocation4], 4
      %s876 = int_to_ptr.vmem [resolvable:$true] %s875
      %s877 = sshll.u32 %s14, 4
      %s878 = int_to_ptr.hbm [resolvable:$true] %s877
      %880 = dma.vmem_to_hbm [thread:$0]  %s876, 896, %s878, [#allocation5]
    $region61: #{autoencoder_forward.1} parent=1 // pred_fallthru
      _
    // Predicated region
    $region62: #{autoencoder_forward.1} parent=1 // pred_check
      _
    $region63: #{autoencoder_forward.1} parent=1 // pred_check_branch
      %882 = sbr.rel (0) target = $region65
    $region64: #{autoencoder_forward.1} parent=1 // pred_region
      %884 = dma.done [#allocation3], 128
    $region65: #{autoencoder_forward.1} parent=1 // pred_fallthru
      _
    // Predicated region
    $region66: #{autoencoder_forward.1} parent=1 // pred_check
      _
    $region67: #{autoencoder_forward.1} parent=1 // pred_check_branch
      %886 = sbr.rel (0) target = $region69
    $region68: #{autoencoder_forward.1} parent=1 // pred_region
      %888 = dma.done [#allocation5], 896
    $region69: #{autoencoder_forward.1} parent=1 // pred_fallthru
      _
    %889 = vsyncpa [#allocation3], 1
    %890 = vsyncpa [#allocation5], 1

</llo_original>
